<compile_context>
chip_gen: v5e
topology: v5e:2x2
jax: 0.10.0
libtpu: 0.0.40
codegen_flags: <defaults>
</compile_context>

<pallas_src>
import functools

import jax
import jax.numpy as jnp
from jax import lax
from jax.experimental import pallas as pl
from jax.experimental.pallas import tpu as pltpu

LN_EPS = 1e-5  # nn.LayerNorm default; the module's self.eps=1e-6 is never used.


def _round_up(x, m):
    return (x + m - 1) // m * m


def _func_to_node_sum_kernel(a_ref, m2_ref, g_ref, bg_ref, fold_ref, beta_ref,
                             out_ref, acc_ref):
    # a_ref    : (tk, tn)    column block of A_fn (contracted on dim 0)
    # m2_ref   : (tk, DV)    block of M2 = x_f ⨂ mlp_rule_feature
    # g_ref    : (DV, Dpad)  group-mean reduce matrix (1/V entries)
    # bg_ref   : (Dpad, DV)  group broadcast matrix with LN gamma folded in
    # fold_ref : (DV, V)     mean-over-D fold matrix (1/D entries)
    # beta_ref : (1, DV)     LN beta tiled over D
    # out_ref  : (tn, V)
    # acc_ref  : (tn, DV)    f32 accumulator scratch (lives across the K axis)
    k = pl.program_id(1)

    @pl.when(k == 0)
    def _():
        acc_ref[...] = jnp.zeros_like(acc_ref)

    # acc[n, dv] += sum_f a[f, n] * m2[f, dv]   (lhs contracted on dim 0 -> no
    # HBM transpose of A is ever materialized)
    acc_ref[...] += lax.dot_general(
        a_ref[...], m2_ref[...],
        dimension_numbers=(((0,), (0,)), ((), ())),
        preferred_element_type=jnp.float32)

    @pl.when(k == pl.num_programs(1) - 1)
    def _():
        mm_dtype = g_ref.dtype
        wf = acc_ref[...]                                           # (tn, DV) f32
        g = g_ref[...]
        # Per-(node, d) group mean / mean-of-squares over the V lanes of each group.
        mu = jnp.dot(wf.astype(mm_dtype), g,
                     preferred_element_type=jnp.float32)            # (tn, Dpad)
        ex2 = jnp.dot((wf * wf).astype(mm_dtype), g,
                      preferred_element_type=jnp.float32)           # (tn, Dpad)
        var = jnp.maximum(ex2 - mu * mu, 0.0)                       # clamp cancellation
        inv = lax.rsqrt(var + LN_EPS)
        # Broadcast the stats back to all V lanes of each group (MXU), gamma folded.
        bg = bg_ref[...]
        inv_g = jnp.dot(inv.astype(mm_dtype), bg,
                        preferred_element_type=jnp.float32)         # (tn, DV)
        mui_g = jnp.dot((mu * inv).astype(mm_dtype), bg,
                        preferred_element_type=jnp.float32)         # (tn, DV)
        act = jnp.maximum(wf * inv_g - mui_g + beta_ref[...], 0.0)  # LN + relu
        # Mean over D folded into a (DV, V) matmul.
        out_ref[...] = jnp.dot(act.astype(mm_dtype), fold_ref[...],
                               preferred_element_type=jnp.float32).astype(out_ref.dtype)


@functools.partial(jax.jit, static_argnames=("node_tile", "use_bf16_matmul"))
def func_to_node_sum(A_fn, x_f, mlp_rule_feature, gamma, beta, *,
                     node_tile=None, use_bf16_matmul=False):
    F_, N = A_fn.shape
    D = x_f.shape[1]
    V = mlp_rule_feature.shape[1]
    DV = D * V
    Dpad = _round_up(max(D, 1), 128)
    assert x_f.shape[0] == F_ and mlp_rule_feature.shape[0] == F_

    mm_dtype = jnp.bfloat16 if use_bf16_matmul else jnp.float32
    itemsize = 2 if use_bf16_matmul else 4

    # ---- generation-aware VMEM budget -------------------------------------
    try:
        vmem_cap = int(pltpu.get_tpu_info().vmem_capacity_bytes)
    except Exception:
        vmem_cap = 64 << 20                 # conservative (v7x per-TC) fallback
    budget = int(0.8 * vmem_cap) - (8 << 20)

    # ---- node tile ----------------------------------------------------------
    if N <= 128:
        tn = N                              # single full block (lane rule: == full dim)
    else:
        if node_tile is not None:
            cap = max(128, (int(node_tile) // 128) * 128)
        else:
            cap = 512 if vmem_cap >= (96 << 20) else 256   # v5e/v6e vs v7x
        tn = min(cap, _round_up(-(-N // 2), 128))          # keep >=2 node blocks (v7x TCs)

    # ---- F tile (reduction axis) -------------------------------------------
    def _plan_bytes(tn_, tk_):
        const_bytes = itemsize * (2 * DV * Dpad + DV * V) + 4 * DV
        return (2 * itemsize * tk_ * tn_        # A column block (double-buffered)
                + 2 * itemsize * tk_ * DV       # M2 block (double-buffered)
                + 2 * const_bytes               # "resident" constants (assume 2 buffers)
                + 2 * 4 * tn_ * V               # output block
                + 4 * tn_ * DV)                 # f32 accumulator scratch

    tk = F_
    if _plan_bytes(tn, tk) > budget:
        for cand in (4096, 2048, 1024, 512, 256, 128):
            if cand < F_ and _plan_bytes(tn, cand) <= budget:
                tk = cand
                break
        else:
            tk = 128
        while _plan_bytes(tn, tk) > budget and N > 128 and tn > 128:
            tn = max(128, (tn // 2 // 128) * 128)

    f_pad = F_ if tk == F_ else _round_up(F_, tk)
    k_blocks = max(1, f_pad // tk)
    n_blocks = -(-N // tn)

    # ---- grid-invariant precompute (done once, outside the kernel) ---------
    a = A_fn.astype(mm_dtype)
    m2 = (x_f[:, :, None] * mlp_rule_feature[:, None, :]).reshape(F_, DV)
    m2 = m2.astype(mm_dtype)
    if f_pad != F_:
        # Zero-padding keeps the accumulation exact.
        # TODO(synk): mask the ragged last K block in-kernel to avoid this A copy.
        a = jnp.pad(a, ((0, f_pad - F_), (0, 0)))
        m2 = jnp.pad(m2, ((0, f_pad - F_), (0, 0)))

    eye_d = jnp.eye(D, dtype=jnp.float32)
    g = jnp.repeat(eye_d, V, axis=0) * (1.0 / V)                       # (DV, D)
    g = jnp.pad(g, ((0, 0), (0, Dpad - D))).astype(mm_dtype)           # (DV, Dpad)
    bg = jnp.kron(eye_d, gamma.reshape(1, V).astype(jnp.float32))      # (D, DV)
    bg = jnp.pad(bg, ((0, Dpad - D), (0, 0))).astype(mm_dtype)         # (Dpad, DV)
    fold = (jnp.tile(jnp.eye(V, dtype=jnp.float32), (D, 1)) * (1.0 / D)).astype(mm_dtype)
    beta_rep = jnp.tile(beta.reshape(1, V).astype(jnp.float32), (1, D))  # (1, DV)

    plan = _plan_bytes(tn, tk)
    vmem_limit = int(min(max(plan + (8 << 20), 32 << 20), int(0.9 * vmem_cap)))

    flops = (2 * N * f_pad * DV            # main reduction
             + 4 * N * DV * Dpad           # group stats (mu, E[x^2])
             + 4 * N * Dpad * DV           # stat broadcasts
             + 2 * N * DV * V)             # mean over D
    bytes_accessed = (itemsize * (f_pad * N + n_blocks * f_pad * DV
                                  + 2 * DV * Dpad + DV * V)
                      + 4 * (DV + N * V))
    cost = pl.CostEstimate(flops=int(flops), transcendentals=int(N * Dpad),
                           bytes_accessed=int(bytes_accessed))

    out = pl.pallas_call(
        _func_to_node_sum_kernel,
        out_shape=jax.ShapeDtypeStruct((N, V), jnp.float32),
        grid=(n_blocks, k_blocks),
        in_specs=[
            pl.BlockSpec((tk, tn), lambda i, k: (k, i)),     # A_fn column block
            pl.BlockSpec((tk, DV), lambda i, k: (k, 0)),     # M2 block
            pl.BlockSpec((DV, Dpad), lambda i, k: (0, 0)),   # group-mean reduce matrix
            pl.BlockSpec((Dpad, DV), lambda i, k: (0, 0)),   # broadcast matrix (gamma folded)
            pl.BlockSpec((DV, V), lambda i, k: (0, 0)),      # mean-over-D fold matrix
            pl.BlockSpec((1, DV), lambda i, k: (0, 0)),      # beta tiled over D
        ],
        out_specs=pl.BlockSpec((tn, V), lambda i, k: (i, 0)),
        scratch_shapes=[pltpu.VMEM((tn, DV), jnp.float32)],
        compiler_params=pltpu.CompilerParams(
            dimension_semantics=("parallel", "arbitrary"),
            vmem_limit_bytes=vmem_limit),
        cost_estimate=cost,
    )(a, m2, g, bg, fold, beta_rep)
    return out


def func_to_node_sum_ref(A_fn, x_f, mlp_rule_feature, gamma, beta):
    """Pure-JAX reference mirroring the PyTorch forward exactly."""
    weight = jnp.transpose(A_fn)[:, :, None]                 # (N, F, 1)
    message = x_f[None, :, :]                                 # (1, F, D)
    feature = jnp.swapaxes(message * weight, 1, 2)            # (N, D, F)
    wf = jnp.matmul(feature, mlp_rule_feature)                # (N, D, V)
    mu = wf.mean(-1, keepdims=True)
    var = ((wf - mu) ** 2).mean(-1, keepdims=True)
    normed = (wf - mu) / jnp.sqrt(var + LN_EPS) * gamma + beta
    return jnp.maximum(normed, 0.0).mean(axis=1)              # (N, V)


if __name__ == "__main__":
    base_key = jax.random.PRNGKey(0)

    def run_case(F_, N, D, V, use_bf16, atol, rtol):
        key = jax.random.fold_in(base_key, F_ * 1000 + N)
        k1, k2, k3, k4, k5 = jax.random.split(key, 5)
        A_fn = jax.random.uniform(k1, (F_, N), dtype=jnp.float32)
        x_f = jax.random.normal(k2, (F_, D), dtype=jnp.float32)
        m = jax.random.normal(k3, (F_, V), dtype=jnp.float32)
        gamma = 1.0 + 0.1 * jax.random.normal(k4, (V,), dtype=jnp.float32)
        beta = 0.1 * jax.random.normal(k5, (V,), dtype=jnp.float32)

        out = jax.block_until_ready(
            func_to_node_sum(A_fn, x_f, m, gamma, beta, use_bf16_matmul=use_bf16))
        ref = func_to_node_sum_ref(A_fn, x_f, m, gamma, beta)
        assert out.shape == (N, V)
        assert bool(jnp.all(jnp.isfinite(out))), "non-finite output"
        assert jnp.allclose(out, ref, atol=atol, rtol=rtol), (
            f"mismatch vs reference (F={F_}, N={N}, D={D}, V={V}, bf16={use_bf16})")

    # small canonical shapes: F functions, N nodes, D message dim, V = vector_dim
    run_case(8, 16, 8, 32, False, 1e-4, 1e-4)     # tiny, single blocks, f32
    run_case(96, 200, 4, 32, False, 1e-4, 1e-4)   # 2 node blocks incl. ragged tail
    run_case(8, 16, 8, 32, True, 2e-1, 2e-1)      # bf16 MXU path (looser numerics)

    print("KERNEL_OK")
</pallas_src>

<mosaic_0001>
module attributes {stable_mosaic.version = 11 : i64} {
  func.func @_func_to_node_sum_kernel(%arg0: i32, %arg1: i32, %arg2: memref<8x16xf32, #tpu.memory_space<vmem>>, %arg3: memref<8x256xf32, #tpu.memory_space<vmem>>, %arg4: memref<256x128xf32, #tpu.memory_space<vmem>>, %arg5: memref<128x256xf32, #tpu.memory_space<vmem>>, %arg6: memref<256x32xf32, #tpu.memory_space<vmem>>, %arg7: memref<1x256xf32, #tpu.memory_space<vmem>>, %arg8: memref<16x32xf32, #tpu.memory_space<vmem>>, %arg9: memref<16x256xf32, #tpu.memory_space<vmem>>) attributes {dimension_semantics = [#tpu.dimension_semantics<parallel>, #tpu.dimension_semantics<arbitrary>], iteration_bounds = array<i64: 1, 1>, scalar_prefetch = 0 : i64, scratch_operands = 1 : i64, tpu.core_type = #tpu.core_type<tc>, window_params = [{transform_indices = @transform_0, window_bounds = array<i64: 8, 16>}, {transform_indices = @transform_1, window_bounds = array<i64: 8, 256>}, {pipeline_mode = #tpu.pipeline_mode<synchronous>, transform_indices = @transform_2, window_bounds = array<i64: 256, 128>}, {pipeline_mode = #tpu.pipeline_mode<synchronous>, transform_indices = @transform_3, window_bounds = array<i64: 128, 256>}, {pipeline_mode = #tpu.pipeline_mode<synchronous>, transform_indices = @transform_4, window_bounds = array<i64: 256, 32>}, {pipeline_mode = #tpu.pipeline_mode<synchronous>, transform_indices = @transform_5, window_bounds = array<i64: 1, 256>}, {transform_indices = @transform_6, window_bounds = array<i64: 16, 32>}]} {
    %c0_i32 = arith.constant 0 : i32
    %0 = arith.cmpi eq, %arg1, %c0_i32 : i32
    %1 = arith.extui %0 : i1 to i32
    %c0_i32_0 = arith.constant 0 : i32
    %2 = arith.cmpi ne, %1, %c0_i32_0 : i32
    scf.if %2 {
      %cst_10 = arith.constant 0.000000e+00 : f32
      %12 = vector.broadcast %cst_10 : f32 to vector<16x256xf32>
      %c0_11 = arith.constant 0 : index
      %c0_12 = arith.constant 0 : index
      %13 = vector.load %arg9[%c0_11, %c0_12] : memref<16x256xf32, #tpu.memory_space<vmem>>, vector<16x256xf32>
      tpu.vector_store %arg9[%c0_11, %c0_12], %12 {strides = array<i32>} : memref<16x256xf32, #tpu.memory_space<vmem>>, vector<16x256xf32>,
    } else {
    }
    %c0 = arith.constant 0 : index
    %c0_1 = arith.constant 0 : index
    %3 = vector.load %arg9[%c0, %c0_1] : memref<16x256xf32, #tpu.memory_space<vmem>>, vector<16x256xf32>
    %c0_2 = arith.constant 0 : index
    %c0_3 = arith.constant 0 : index
    %4 = vector.load %arg2[%c0_2, %c0_3] : memref<8x16xf32, #tpu.memory_space<vmem>>, vector<8x16xf32>
    %c0_4 = arith.constant 0 : index
    %c0_5 = arith.constant 0 : index
    %5 = vector.load %arg3[%c0_4, %c0_5] : memref<8x256xf32, #tpu.memory_space<vmem>>, vector<8x256xf32>
    %cst = arith.constant dense<0.000000e+00> : vector<16x256xf32>
    %6 = tpu.matmul %4, %5, %cst {dimension_numbers = #tpu.dot_dimension_numbers<[0], [0], [1], [1], [0, 1, 1, 1], [], []>} : vector<8x16xf32>, vector<8x256xf32>, vector<16x256xf32> -> vector<16x256xf32>
    %7 = arith.addf %3, %6 : vector<16x256xf32>
    %c0_6 = arith.constant 0 : index
    %c0_7 = arith.constant 0 : index
    %8 = vector.load %arg9[%c0_6, %c0_7] : memref<16x256xf32, #tpu.memory_space<vmem>>, vector<16x256xf32>
    tpu.vector_store %arg9[%c0_6, %c0_7], %7 {strides = array<i32>} : memref<16x256xf32, #tpu.memory_space<vmem>>, vector<16x256xf32>,
    %c0_i32_8 = arith.constant 0 : i32
    %9 = arith.cmpi eq, %arg1, %c0_i32_8 : i32
    %10 = arith.extui %9 : i1 to i32
    %c0_i32_9 = arith.constant 0 : i32
    %11 = arith.cmpi ne, %10, %c0_i32_9 : i32
    scf.if %11 {
      %c0_10 = arith.constant 0 : index
      %c0_11 = arith.constant 0 : index
      %12 = vector.load %arg9[%c0_10, %c0_11] : memref<16x256xf32, #tpu.memory_space<vmem>>, vector<16x256xf32>
      %c0_12 = arith.constant 0 : index
      %c0_13 = arith.constant 0 : index
      %13 = vector.load %arg4[%c0_12, %c0_13] : memref<256x128xf32, #tpu.memory_space<vmem>>, vector<256x128xf32>
      %cst_14 = arith.constant dense<0.000000e+00> : vector<16x128xf32>
      %14 = tpu.matmul %12, %13, %cst_14 {dimension_numbers = #tpu.dot_dimension_numbers<[1], [0], [0], [1], [0, 0, 1, 1], [], []>} : vector<16x256xf32>, vector<256x128xf32>, vector<16x128xf32> -> vector<16x128xf32>
      %15 = arith.mulf %12, %12 : vector<16x256xf32>
      %cst_15 = arith.constant dense<0.000000e+00> : vector<16x128xf32>
      %16 = tpu.matmul %15, %13, %cst_15 {dimension_numbers = #tpu.dot_dimension_numbers<[1], [0], [0], [1], [0, 0, 1, 1], [], []>} : vector<16x256xf32>, vector<256x128xf32>, vector<16x128xf32> -> vector<16x128xf32>
      %17 = arith.mulf %14, %14 : vector<16x128xf32>
      %18 = arith.subf %16, %17 : vector<16x128xf32>
      %cst_16 = arith.constant 0.000000e+00 : f32
      %19 = vector.broadcast %cst_16 : f32 to vector<16x128xf32>
      %20 = arith.maximumf %18, %19 : vector<16x128xf32>
      %cst_17 = arith.constant 9.99999974E-6 : f32
      %21 = vector.broadcast %cst_17 : f32 to vector<16x128xf32>
      %22 = arith.addf %20, %21 : vector<16x128xf32>
      %23 = math.rsqrt %22 : vector<16x128xf32>
      %c0_18 = arith.constant 0 : index
      %c0_19 = arith.constant 0 : index
      %24 = vector.load %arg5[%c0_18, %c0_19] : memref<128x256xf32, #tpu.memory_space<vmem>>, vector<128x256xf32>
      %cst_20 = arith.constant dense<0.000000e+00> : vector<16x256xf32>
      %25 = tpu.matmul %23, %24, %cst_20 {dimension_numbers = #tpu.dot_dimension_numbers<[1], [0], [0], [1], [0, 0, 1, 1], [], []>} : vector<16x128xf32>, vector<128x256xf32>, vector<16x256xf32> -> vector<16x256xf32>
      %26 = arith.mulf %14, %23 : vector<16x128xf32>
      %cst_21 = arith.constant dense<0.000000e+00> : vector<16x256xf32>
      %27 = tpu.matmul %26, %24, %cst_21 {dimension_numbers = #tpu.dot_dimension_numbers<[1], [0], [0], [1], [0, 0, 1, 1], [], []>} : vector<16x128xf32>, vector<128x256xf32>, vector<16x256xf32> -> vector<16x256xf32>
      %28 = arith.mulf %12, %25 : vector<16x256xf32>
      %29 = arith.subf %28, %27 : vector<16x256xf32>
      %c0_22 = arith.constant 0 : index
      %c0_23 = arith.constant 0 : index
      %30 = vector.load %arg7[%c0_22, %c0_23] : memref<1x256xf32, #tpu.memory_space<vmem>>, vector<1x256xf32>
      %31 = vector.broadcast %30 : vector<1x256xf32> to vector<16x256xf32>
      %32 = arith.addf %29, %31 : vector<16x256xf32>
      %cst_24 = arith.constant 0.000000e+00 : f32
      %33 = vector.broadcast %cst_24 : f32 to vector<16x256xf32>
      %34 = arith.maximumf %32, %33 : vector<16x256xf32>
      %c0_25 = arith.constant 0 : index
      %c0_26 = arith.constant 0 : index
      %35 = vector.load %arg6[%c0_25, %c0_26] : memref<256x32xf32, #tpu.memory_space<vmem>>, vector<256x32xf32>
      %cst_27 = arith.constant dense<0.000000e+00> : vector<16x32xf32>
      %36 = tpu.matmul %34, %35, %cst_27 {dimension_numbers = #tpu.dot_dimension_numbers<[1], [0], [0], [1], [0, 0, 1, 1], [], []>} : vector<16x256xf32>, vector<256x32xf32>, vector<16x32xf32> -> vector<16x32xf32>
      %c0_28 = arith.constant 0 : index
      %c0_29 = arith.constant 0 : index
      %37 = vector.load %arg8[%c0_28, %c0_29] : memref<16x32xf32, #tpu.memory_space<vmem>>, vector<16x32xf32>
      tpu.vector_store %arg8[%c0_28, %c0_29], %36 {strides = array<i32>} : memref<16x32xf32, #tpu.memory_space<vmem>>, vector<16x32xf32>,
    } else {
    }
    return
  }
  func.func @transform_0(%arg0: i32, %arg1: i32) -> (i32, i32) {
    %c0_i32 = arith.constant 0 : i32
    return %arg1, %arg0 : i32, i32
  }
  func.func @transform_1(%arg0: i32, %arg1: i32) -> (i32, i32) {
    %c0_i32 = arith.constant 0 : i32
    %c0_i32_0 = arith.constant 0 : i32
    return %arg1, %c0_i32 : i32, i32
  }
  func.func @transform_2(%arg0: i32, %arg1: i32) -> (i32, i32) {
    %c0_i32 = arith.constant 0 : i32
    %c0_i32_0 = arith.constant 0 : i32
    %c0_i32_1 = arith.constant 0 : i32
    return %c0_i32, %c0_i32_0 : i32, i32
  }
  func.func @transform_3(%arg0: i32, %arg1: i32) -> (i32, i32) {
    %c0_i32 = arith.constant 0 : i32
    %c0_i32_0 = arith.constant 0 : i32
    %c0_i32_1 = arith.constant 0 : i32
    return %c0_i32, %c0_i32_0 : i32, i32
  }
  func.func @transform_4(%arg0: i32, %arg1: i32) -> (i32, i32) {
    %c0_i32 = arith.constant 0 : i32
    %c0_i32_0 = arith.constant 0 : i32
    %c0_i32_1 = arith.constant 0 : i32
    return %c0_i32, %c0_i32_0 : i32, i32
  }
  func.func @transform_5(%arg0: i32, %arg1: i32) -> (i32, i32) {
    %c0_i32 = arith.constant 0 : i32
    %c0_i32_0 = arith.constant 0 : i32
    %c0_i32_1 = arith.constant 0 : i32
    return %c0_i32, %c0_i32_0 : i32, i32
  }
  func.func @transform_6(%arg0: i32, %arg1: i32) -> (i32, i32) {
    %c0_i32 = arith.constant 0 : i32
    %c0_i32_0 = arith.constant 0 : i32
    return %arg0, %c0_i32 : i32, i32
  }
}

</mosaic_0001>

<llo_original>
// kernel: func_to_node_sum.1
$region0: #{func_to_node_sum.1}
  #allocation0 [shape = 'u32[]', space=smem, size = 0x4, offset = 0x4, fixed_abs, tag = 'smem constant byte address 0x4 - core index']
  #allocation1 [shape = 'u32[72,128]{1,0:T(1,128)}', space=vmem, size = 0x9000, scoped, tag = 'internal scratch']
  #allocation2 [shape = 'f32[16,256]{1,0:T(8,128)}', space=vmem, size = 0x4000, scoped, tag = 'scratch operand']
  %s0 = inlined_call_operand.vmem [shape: f32[8,16], index: 0, kind: input, shape index: {}]
  %s1 = inlined_call_operand.vmem [shape: f32[8,256], index: 1, kind: input, shape index: {}]
  %s2 = inlined_call_operand.vmem [shape: f32[256,128], index: 2, kind: input, shape index: {}]
  %s3 = inlined_call_operand.vmem [shape: f32[128,256], index: 3, kind: input, shape index: {}]
  %s4 = inlined_call_operand.vmem [shape: f32[256,32], index: 4, kind: input, shape index: {}]
  %s5 = inlined_call_operand.vmem [shape: f32[1,256], index: 5, kind: input, shape index: {}]
  %s6 = inlined_call_operand.hbm [shape: f32[16,32], index: 6, kind: output, shape index: {}]
  %s7 = sld [smem:[#allocation0]]
  $region42: #{func_to_node_sum.1} parent=0
    _
  %s9 = ssub.s32 1, %s7
  %s10 = scalar_select 0, %s9, %s7
  $region1: #{func_to_node_sum.1} parent=0
    #allocation3 [shape = 'u8[8192]{0}', space=vmem, size = 0x2000, scoped, tag = 'output window, operand 0, single buffered']
    #allocation4 [shape = 's32[1]{0}', space=sflag, size = 0x4, scoped, tag = 'scoped memory for func_to_node_sum.1']
    %11 = vsyncpa [#allocation4], 0
    // Predicated region
    $region2: #{func_to_node_sum.1} parent=1 // pred_check
      _
    $region3: #{func_to_node_sum.1} parent=1 // pred_check_branch
      %13 = sbr.rel (0) target = $region5
    $region4: #{func_to_node_sum.1} parent=1 // pred_region
      _
    $region5: #{func_to_node_sum.1} parent=1 // pred_fallthru
      _
    // Predicated region
    $region6: #{func_to_node_sum.1} parent=1 // pred_check
      _
    $region7: #{func_to_node_sum.1} parent=1 // pred_check_branch
      %15 = sbr.rel (0) target = $region9
    $region8: #{func_to_node_sum.1} parent=1 // pred_region
      _
    $region9: #{func_to_node_sum.1} parent=1 // pred_fallthru
      _
    // Predicated region
    $region10: #{func_to_node_sum.1} parent=1 // pred_check
      _
    $region11: #{func_to_node_sum.1} parent=1 // pred_check_branch
      %17 = sbr.rel (0) target = $region13
    $region12: #{func_to_node_sum.1} parent=1 // pred_region
      _
    $region13: #{func_to_node_sum.1} parent=1 // pred_fallthru
      _
    // Predicated region
    $region14: #{func_to_node_sum.1} parent=1 // pred_check
      _
    $region15: #{func_to_node_sum.1} parent=1 // pred_check_branch
      %19 = sbr.rel (0) target = $region17
    $region16: #{func_to_node_sum.1} parent=1 // pred_region
      _
    $region17: #{func_to_node_sum.1} parent=1 // pred_fallthru
      _
    // Predicated region
    $region18: #{func_to_node_sum.1} parent=1 // pred_check
      _
    $region19: #{func_to_node_sum.1} parent=1 // pred_check_branch
      %21 = sbr.rel (0) target = $region21
    $region20: #{func_to_node_sum.1} parent=1 // pred_region
      _
    $region21: #{func_to_node_sum.1} parent=1 // pred_fallthru
      _
    // Predicated region
    $region22: #{func_to_node_sum.1} parent=1 // pred_check
      _
    $region23: #{func_to_node_sum.1} parent=1 // pred_check_branch
      %23 = sbr.rel (0) target = $region25
    $region24: #{func_to_node_sum.1} parent=1 // pred_region
      _
    $region25: #{func_to_node_sum.1} parent=1 // pred_fallthru
      _
    %p24 = scmp.eq.s32.totalorder 0, 0
    // Predicated region
    $region26: #{func_to_node_sum.1} parent=1 // pred_check
      %p25 = pneg %p24
    $region27: #{func_to_node_sum.1} parent=1 // pred_check_branch
      %27 = sbr.rel (%p25) target = $region29
    $region28: #{func_to_node_sum.1} parent=1 // pred_region
      %28 = vst [vmem:[#allocation2] sm:$0xff] 0.0
      %29 = vst [vmem:[#allocation2 + $0x8] sm:$0xff] 0.0
      %30 = vst [vmem:[#allocation2 + $0x10] sm:$0xff] 0.0
      %31 = vst [vmem:[#allocation2 + $0x18] sm:$0xff] 0.0
    $region29: #{func_to_node_sum.1} parent=1 // pred_fallthru
      _
    %v32 = vld [vmem:[#allocation2] sm:$0xff]
    %v33 = vld [vmem:[#allocation2 + $0x8] sm:$0xff]
    %v34 = vld [vmem:[#allocation2 + $0x10] sm:$0xff]
    %v35 = vld [vmem:[#allocation2 + $0x18] sm:$0xff]
    %v36 = vld [vmem:[%s0] sm:$0xff]
    %v37 = vld [vmem:[%s1] sm:$0xff]
    %v38 = vld [vmem:[%s1 + $0x8] sm:$0xff]
    %39 = vxpose.xlu0.b32.start [1/16] %v36, 128
    %40 = vxpose.xlu0.b32.cont [2/16] 0.0, 128
    %41 = vxpose.xlu0.b32.cont [3/16] 0.0, 128
    %42 = vxpose.xlu0.b32.cont [4/16] 0.0, 128
    %43 = vxpose.xlu0.b32.cont [5/16] 0.0, 128
    %44 = vxpose.xlu0.b32.cont [6/16] 0.0, 128
    %45 = vxpose.xlu0.b32.cont [7/16] 0.0, 128
    %46 = vxpose.xlu0.b32.cont [8/16] 0.0, 128
    %47 = vxpose.xlu0.b32.cont [9/16] 0.0, 128
    %48 = vxpose.xlu0.b32.cont [10/16] 0.0, 128
    %49 = vxpose.xlu0.b32.cont [11/16] 0.0, 128
    %50 = vxpose.xlu0.b32.cont [12/16] 0.0, 128
    %51 = vxpose.xlu0.b32.cont [13/16] 0.0, 128
    %52 = vxpose.xlu0.b32.cont [14/16] 0.0, 128
    %53 = vxpose.xlu0.b32.cont [15/16] 0.0, 128
    %54 = vxpose.xlu0.b32.end [16/16] 0.0, 128
    %v55 = vpop.trf.xlu0
    %v56 = vpop.trf.xlu0
    %v57 = vpop.trf.xlu0
    %v58 = vpop.trf.xlu0
    %v59 = vpop.trf.xlu0
    %v60 = vpop.trf.xlu0
    %v61 = vpop.trf.xlu0
    %v62 = vpop.trf.xlu0
    %v63 = vpop.trf.xlu0
    %v64 = vpop.trf.xlu0
    %v65 = vpop.trf.xlu0
    %v66 = vpop.trf.xlu0
    %v67 = vpop.trf.xlu0
    %v68 = vpop.trf.xlu0
    %v69 = vpop.trf.xlu0
    %v70 = vpop.trf.xlu0
    %vm71 = vcmask 64512
    %v73 = vsel %vm71, %v55, 0
    %v76 = vsel %vm71, %v56, 0
    %78 = vmatpush.msra.mxu0 0.0
    %79 = vmatpush.msra.mxu0 0.0
    %80 = vmatpush.msra.mxu0 0.0
    %81 = vmatpush.msra.mxu0 0.0
    %82 = vmatpush.msra.mxu0 0.0
    %83 = vmatpush.msra.mxu0 0.0
    %84 = vmatpush.msra.mxu0 0.0
    %85 = vmatpush.msra.mxu0 0.0
    %86 = vmatpush.msra.mxu0 0.0
    %87 = vmatpush.msra.mxu0 0.0
    %88 = vmatpush.msra.mxu0 0.0
    %89 = vmatpush.msra.mxu0 0.0
    %90 = vmatpush.msra.mxu0 0.0
    %91 = vmatpush.msra.mxu0 0.0
    %92 = vmatpush.msra.mxu0 0.0
    %93 = vmatpush.msra.mxu0 %v37
    %94 = vmatmul.f32.gmra.mxu0 %v73
    %v95 = vpop.f32.mrf.mxu0
    %v96 = vadd.f32 0.0, %v95
    %97 = vmatmul.f32.gmra.mxu0 %v76
    %v98 = vpop.f32.mrf.mxu0
    %v99 = vadd.f32 0.0, %v98
    %100 = vdwg.mxu0
    %101 = vmatpush.msra.mxu0 0.0
    %102 = vmatpush.msra.mxu0 0.0
    %103 = vmatpush.msra.mxu0 0.0
    %104 = vmatpush.msra.mxu0 0.0
    %105 = vmatpush.msra.mxu0 0.0
    %106 = vmatpush.msra.mxu0 0.0
    %107 = vmatpush.msra.mxu0 0.0
    %108 = vmatpush.msra.mxu0 0.0
    %109 = vmatpush.msra.mxu0 0.0
    %110 = vmatpush.msra.mxu0 0.0
    %111 = vmatpush.msra.mxu0 0.0
    %112 = vmatpush.msra.mxu0 0.0
    %113 = vmatpush.msra.mxu0 0.0
    %114 = vmatpush.msra.mxu0 0.0
    %115 = vmatpush.msra.mxu0 0.0
    %116 = vmatpush.msra.mxu0 %v38
    %117 = vmatmul.f32.gmra.mxu0 %v73
    %v118 = vpop.f32.mrf.mxu0
    %v119 = vadd.f32 0.0, %v118
    %120 = vmatmul.f32.gmra.mxu0 %v76
    %v121 = vpop.f32.mrf.mxu0
    %v122 = vadd.f32 0.0, %v121
    %123 = vdwg.mxu0
    %v124 = vadd.f32 %v32, %v96
    %v125 = vadd.f32 %v33, %v119
    %v126 = vadd.f32 %v34, %v99
    %v127 = vadd.f32 %v35, %v122
    %128 = vst [vmem:[#allocation2] sm:$0xff] %v124
    %129 = vst [vmem:[#allocation2 + $0x8] sm:$0xff] %v125
    %130 = vst [vmem:[#allocation2 + $0x10] sm:$0xff] %v126
    %131 = vst [vmem:[#allocation2 + $0x18] sm:$0xff] %v127
    // Predicated region
    $region30: #{func_to_node_sum.1} parent=1 // pred_check
      %p132 = pneg %p24
    $region31: #{func_to_node_sum.1} parent=1 // pred_check_branch
      %134 = sbr.rel (%p132) target = $region33
    $region32: #{func_to_node_sum.1} parent=1 // pred_region
      %v135 = vld [vmem:[#allocation2] sm:$0xff]
      %v136 = vld [vmem:[#allocation2 + $0x8] sm:$0xff]
      %v137 = vld [vmem:[#allocation2 + $0x10] sm:$0xff]
      %v138 = vld [vmem:[#allocation2 + $0x18] sm:$0xff]
      %v139 = vld [vmem:[%s2] sm:$0xff]
      %v140 = vld [vmem:[%s2 + $0x8] sm:$0xff]
      %v141 = vld [vmem:[%s2 + $0x10] sm:$0xff]
      %v142 = vld [vmem:[%s2 + $0x18] sm:$0xff]
      %v143 = vld [vmem:[%s2 + $0x20] sm:$0xff]
      %v144 = vld [vmem:[%s2 + $0x28] sm:$0xff]
      %v145 = vld [vmem:[%s2 + $0x30] sm:$0xff]
      %v146 = vld [vmem:[%s2 + $0x38] sm:$0xff]
      %v147 = vld [vmem:[%s2 + $0x40] sm:$0xff]
      %v148 = vld [vmem:[%s2 + $0x48] sm:$0xff]
      %v149 = vld [vmem:[%s2 + $0x50] sm:$0xff]
      %v150 = vld [vmem:[%s2 + $0x58] sm:$0xff]
      %v151 = vld [vmem:[%s2 + $0x60] sm:$0xff]
      %v152 = vld [vmem:[%s2 + $0x68] sm:$0xff]
      %v153 = vld [vmem:[%s2 + $0x70] sm:$0xff]
      %v154 = vld [vmem:[%s2 + $0x78] sm:$0xff]
      %v155 = vld [vmem:[%s2 + $0x80] sm:$0xff]
      %v156 = vld [vmem:[%s2 + $0x88] sm:$0xff]
      %v157 = vld [vmem:[%s2 + $0x90] sm:$0xff]
      %v158 = vld [vmem:[%s2 + $0x98] sm:$0xff]
      %v159 = vld [vmem:[%s2 + $0xa0] sm:$0xff]
      %v160 = vld [vmem:[%s2 + $0xa8] sm:$0xff]
      %v161 = vld [vmem:[%s2 + $0xb0] sm:$0xff]
      %v162 = vld [vmem:[%s2 + $0xb8] sm:$0xff]
      %v163 = vld [vmem:[%s2 + $0xc0] sm:$0xff]
      %v164 = vld [vmem:[%s2 + $0xc8] sm:$0xff]
      %v165 = vld [vmem:[%s2 + $0xd0] sm:$0xff]
      %v166 = vld [vmem:[%s2 + $0xd8] sm:$0xff]
      %v167 = vld [vmem:[%s2 + $0xe0] sm:$0xff]
      %v168 = vld [vmem:[%s2 + $0xe8] sm:$0xff]
      %v169 = vld [vmem:[%s2 + $0xf0] sm:$0xff]
      %v170 = vld [vmem:[%s2 + $0xf8] sm:$0xff]
      %171 = vmatpush.msra.mxu0 %v154
      %172 = vmatpush.msra.mxu0 %v153
      %173 = vmatpush.msra.mxu0 %v152
      %174 = vmatpush.msra.mxu0 %v151
      %175 = vmatpush.msra.mxu0 %v150
      %176 = vmatpush.msra.mxu0 %v149
      %177 = vmatpush.msra.mxu0 %v148
      %178 = vmatpush.msra.mxu0 %v147
      %179 = vmatpush.msra.mxu0 %v146
      %180 = vmatpush.msra.mxu0 %v145
      %181 = vmatpush.msra.mxu0 %v144
      %182 = vmatpush.msra.mxu0 %v143
      %183 = vmatpush.msra.mxu0 %v142
      %184 = vmatpush.msra.mxu0 %v141
      %185 = vmatpush.msra.mxu0 %v140
      %186 = vmatpush.msra.mxu0 %v139
      %187 = vmatmul.f32.gmra.mxu0 %v135
      %v188 = vpop.f32.mrf.mxu0
      %v189 = vadd.f32 0.0, %v188
      %190 = vmatmul.f32.gmra.mxu0 %v137
      %v191 = vpop.f32.mrf.mxu0
      %v192 = vadd.f32 0.0, %v191
      %193 = vdwg.mxu0
      %194 = vmatpush.msra.mxu0 %v170
      %195 = vmatpush.msra.mxu0 %v169
      %196 = vmatpush.msra.mxu0 %v168
      %197 = vmatpush.msra.mxu0 %v167
      %198 = vmatpush.msra.mxu0 %v166
      %199 = vmatpush.msra.mxu0 %v165
      %200 = vmatpush.msra.mxu0 %v164
      %201 = vmatpush.msra.mxu0 %v163
      %202 = vmatpush.msra.mxu0 %v162
      %203 = vmatpush.msra.mxu0 %v161
      %204 = vmatpush.msra.mxu0 %v160
      %205 = vmatpush.msra.mxu0 %v159
      %206 = vmatpush.msra.mxu0 %v158
      %207 = vmatpush.msra.mxu0 %v157
      %208 = vmatpush.msra.mxu0 %v156
      %209 = vmatpush.msra.mxu0 %v155
      %210 = vmatmul.f32.gmra.mxu0 %v136
      %v211 = vpop.f32.mrf.mxu0
      %v212 = vadd.f32 %v189, %v211
      %213 = vmatmul.f32.gmra.mxu0 %v138
      %v214 = vpop.f32.mrf.mxu0
      %v215 = vadd.f32 %v192, %v214
      %216 = vdwg.mxu0
      %v217 = vmul.f32 %v135, %v135
      %v218 = vmul.f32 %v136, %v136
      %v219 = vmul.f32 %v137, %v137
      %v220 = vmul.f32 %v138, %v138
      %221 = vmatpush.msra.mxu0 %v154
      %222 = vmatpush.msra.mxu0 %v153
      %223 = vmatpush.msra.mxu0 %v152
      %224 = vmatpush.msra.mxu0 %v151
      %225 = vmatpush.msra.mxu0 %v150
      %226 = vmatpush.msra.mxu0 %v149
      %227 = vmatpush.msra.mxu0 %v148
      %228 = vmatpush.msra.mxu0 %v147
      %229 = vmatpush.msra.mxu0 %v146
      %230 = vmatpush.msra.mxu0 %v145
      %231 = vmatpush.msra.mxu0 %v144
      %232 = vmatpush.msra.mxu0 %v143
      %233 = vmatpush.msra.mxu0 %v142
      %234 = vmatpush.msra.mxu0 %v141
      %235 = vmatpush.msra.mxu0 %v140
      %236 = vmatpush.msra.mxu0 %v139
      %237 = vmatmul.f32.gmra.mxu0 %v217
      %v238 = vpop.f32.mrf.mxu0
      %v239 = vadd.f32 0.0, %v238
      %240 = vmatmul.f32.gmra.mxu0 %v219
      %v241 = vpop.f32.mrf.mxu0
      %v242 = vadd.f32 0.0, %v241
      %243 = vdwg.mxu0
      %244 = vmatpush.msra.mxu0 %v170
      %245 = vmatpush.msra.mxu0 %v169
      %246 = vmatpush.msra.mxu0 %v168
      %247 = vmatpush.msra.mxu0 %v167
      %248 = vmatpush.msra.mxu0 %v166
      %249 = vmatpush.msra.mxu0 %v165
      %250 = vmatpush.msra.mxu0 %v164
      %251 = vmatpush.msra.mxu0 %v163
      %252 = vmatpush.msra.mxu0 %v162
      %253 = vmatpush.msra.mxu0 %v161
      %254 = vmatpush.msra.mxu0 %v160
      %255 = vmatpush.msra.mxu0 %v159
      %256 = vmatpush.msra.mxu0 %v158
      %257 = vmatpush.msra.mxu0 %v157
      %258 = vmatpush.msra.mxu0 %v156
      %259 = vmatpush.msra.mxu0 %v155
      %260 = vmatmul.f32.gmra.mxu0 %v218
      %v261 = vpop.f32.mrf.mxu0
      %v262 = vadd.f32 %v239, %v261
      %263 = vmatmul.f32.gmra.mxu0 %v220
      %v264 = vpop.f32.mrf.mxu0
      %v265 = vadd.f32 %v242, %v264
      %266 = vdwg.mxu0
      %v267 = vmul.f32 %v212, %v212
      %v268 = vmul.f32 %v215, %v215
      %v269 = vsub.f32 %v262, %v267
      %v270 = vsub.f32 %v265, %v268
      %v271 = vmax.f32 %v269, 0.0
      %v272 = vmax.f32 %v270, 0.0
      %v273 = vadd.f32 %v271, 1e-05
      %v274 = vadd.f32 %v272, 1e-05
      %v275 = vrsqrt.pop %v273
      %v276 = vmul.f32 %v275, %v273
      %v277 = vmul.f32 %v276, %v275
      %v278 = vmul.f32 0.5, %v277
      %v279 = vsub.f32 1.5, %v278
      %v280 = vmul.f32 %v275, %v279
      %vm281 = vweird.f32 %v273
      %vm282 = vweird.f32 %v275
      %vm283 = vmor %vm281, %vm282
      %v284 = vsel %vm283, %v275, %v280
      %v285 = vrsqrt.pop %v274
      %v286 = vmul.f32 %v285, %v274
      %v287 = vmul.f32 %v286, %v285
      %v288 = vmul.f32 0.5, %v287
      %v289 = vsub.f32 1.5, %v288
      %v290 = vmul.f32 %v285, %v289
      %vm291 = vweird.f32 %v274
      %vm292 = vweird.f32 %v285
      %vm293 = vmor %vm291, %vm292
      %v294 = vsel %vm293, %v285, %v290
      %v295 = vld [vmem:[%s3] sm:$0xff]
      %v296 = vld [vmem:[%s3 + $0x8] sm:$0xff]
      %v297 = vld [vmem:[%s3 + $0x10] sm:$0xff]
      %v298 = vld [vmem:[%s3 + $0x18] sm:$0xff]
      %v299 = vld [vmem:[%s3 + $0x20] sm:$0xff]
      %v300 = vld [vmem:[%s3 + $0x28] sm:$0xff]
      %v301 = vld [vmem:[%s3 + $0x30] sm:$0xff]
      %v302 = vld [vmem:[%s3 + $0x38] sm:$0xff]
      %v303 = vld [vmem:[%s3 + $0x40] sm:$0xff]
      %v304 = vld [vmem:[%s3 + $0x48] sm:$0xff]
      %v305 = vld [vmem:[%s3 + $0x50] sm:$0xff]
      %v306 = vld [vmem:[%s3 + $0x58] sm:$0xff]
      %v307 = vld [vmem:[%s3 + $0x60] sm:$0xff]
      %v308 = vld [vmem:[%s3 + $0x68] sm:$0xff]
      %v309 = vld [vmem:[%s3 + $0x70] sm:$0xff]
      %v310 = vld [vmem:[%s3 + $0x78] sm:$0xff]
      %v311 = vld [vmem:[%s3 + $0x80] sm:$0xff]
      %v312 = vld [vmem:[%s3 + $0x88] sm:$0xff]
      %v313 = vld [vmem:[%s3 + $0x90] sm:$0xff]
      %v314 = vld [vmem:[%s3 + $0x98] sm:$0xff]
      %v315 = vld [vmem:[%s3 + $0xa0] sm:$0xff]
      %v316 = vld [vmem:[%s3 + $0xa8] sm:$0xff]
      %v317 = vld [vmem:[%s3 + $0xb0] sm:$0xff]
      %v318 = vld [vmem:[%s3 + $0xb8] sm:$0xff]
      %v319 = vld [vmem:[%s3 + $0xc0] sm:$0xff]
      %v320 = vld [vmem:[%s3 + $0xc8] sm:$0xff]
      %v321 = vld [vmem:[%s3 + $0xd0] sm:$0xff]
      %v322 = vld [vmem:[%s3 + $0xd8] sm:$0xff]
      %v323 = vld [vmem:[%s3 + $0xe0] sm:$0xff]
      %v324 = vld [vmem:[%s3 + $0xe8] sm:$0xff]
      %v325 = vld [vmem:[%s3 + $0xf0] sm:$0xff]
      %v326 = vld [vmem:[%s3 + $0xf8] sm:$0xff]
      %327 = vmatpush.msra.mxu0 %v325
      %328 = vmatpush.msra.mxu0 %v323
      %329 = vmatpush.msra.mxu0 %v321
      %330 = vmatpush.msra.mxu0 %v319
      %331 = vmatpush.msra.mxu0 %v317
      %332 = vmatpush.msra.mxu0 %v315
      %333 = vmatpush.msra.mxu0 %v313
      %334 = vmatpush.msra.mxu0 %v311
      %335 = vmatpush.msra.mxu0 %v309
      %336 = vmatpush.msra.mxu0 %v307
      %337 = vmatpush.msra.mxu0 %v305
      %338 = vmatpush.msra.mxu0 %v303
      %339 = vmatpush.msra.mxu0 %v301
      %340 = vmatpush.msra.mxu0 %v299
      %341 = vmatpush.msra.mxu0 %v297
      %342 = vmatpush.msra.mxu0 %v295
      %343 = vmatmul.f32.gmra.mxu0 %v284
      %v344 = vpop.f32.mrf.mxu0
      %v345 = vadd.f32 0.0, %v344
      %346 = vmatmul.f32.gmra.mxu0 %v294
      %v347 = vpop.f32.mrf.mxu0
      %v348 = vadd.f32 0.0, %v347
      %349 = vdwg.mxu0
      %350 = vmatpush.msra.mxu0 %v326
      %351 = vmatpush.msra.mxu0 %v324
      %352 = vmatpush.msra.mxu0 %v322
      %353 = vmatpush.msra.mxu0 %v320
      %354 = vmatpush.msra.mxu0 %v318
      %355 = vmatpush.msra.mxu0 %v316
      %356 = vmatpush.msra.mxu0 %v314
      %357 = vmatpush.msra.mxu0 %v312
      %358 = vmatpush.msra.mxu0 %v310
      %359 = vmatpush.msra.mxu0 %v308
      %360 = vmatpush.msra.mxu0 %v306
      %361 = vmatpush.msra.mxu0 %v304
      %362 = vmatpush.msra.mxu0 %v302
      %363 = vmatpush.msra.mxu0 %v300
      %364 = vmatpush.msra.mxu0 %v298
      %365 = vmatpush.msra.mxu0 %v296
      %366 = vmatmul.f32.gmra.mxu0 %v284
      %v367 = vpop.f32.mrf.mxu0
      %v368 = vadd.f32 0.0, %v367
      %369 = vmatmul.f32.gmra.mxu0 %v294
      %v370 = vpop.f32.mrf.mxu0
      %v371 = vadd.f32 0.0, %v370
      %372 = vdwg.mxu0
      %v373 = vmul.f32 %v212, %v284
      %v374 = vmul.f32 %v215, %v294
      %375 = vmatpush.msra.mxu0 %v325
      %376 = vmatpush.msra.mxu0 %v323
      %377 = vmatpush.msra.mxu0 %v321
      %378 = vmatpush.msra.mxu0 %v319
      %379 = vmatpush.msra.mxu0 %v317
      %380 = vmatpush.msra.mxu0 %v315
      %381 = vmatpush.msra.mxu0 %v313
      %382 = vmatpush.msra.mxu0 %v311
      %383 = vmatpush.msra.mxu0 %v309
      %384 = vmatpush.msra.mxu0 %v307
      %385 = vmatpush.msra.mxu0 %v305
      %386 = vmatpush.msra.mxu0 %v303
      %387 = vmatpush.msra.mxu0 %v301
      %388 = vmatpush.msra.mxu0 %v299
      %389 = vmatpush.msra.mxu0 %v297
      %390 = vmatpush.msra.mxu0 %v295
      %391 = vmatmul.f32.gmra.mxu0 %v373
      %v392 = vpop.f32.mrf.mxu0
      %v393 = vadd.f32 0.0, %v392
      %394 = vmatmul.f32.gmra.mxu0 %v374
      %v395 = vpop.f32.mrf.mxu0
      %v396 = vadd.f32 0.0, %v395
      %397 = vdwg.mxu0
      %398 = vmatpush.msra.mxu0 %v326
      %399 = vmatpush.msra.mxu0 %v324
      %400 = vmatpush.msra.mxu0 %v322
      %401 = vmatpush.msra.mxu0 %v320
      %402 = vmatpush.msra.mxu0 %v318
      %403 = vmatpush.msra.mxu0 %v316
      %404 = vmatpush.msra.mxu0 %v314
      %405 = vmatpush.msra.mxu0 %v312
      %406 = vmatpush.msra.mxu0 %v310
      %407 = vmatpush.msra.mxu0 %v308
      %408 = vmatpush.msra.mxu0 %v306
      %409 = vmatpush.msra.mxu0 %v304
      %410 = vmatpush.msra.mxu0 %v302
      %411 = vmatpush.msra.mxu0 %v300
      %412 = vmatpush.msra.mxu0 %v298
      %413 = vmatpush.msra.mxu0 %v296
      %414 = vmatmul.f32.gmra.mxu0 %v373
      %v415 = vpop.f32.mrf.mxu0
      %v416 = vadd.f32 0.0, %v415
      %417 = vmatmul.f32.gmra.mxu0 %v374
      %v418 = vpop.f32.mrf.mxu0
      %v419 = vadd.f32 0.0, %v418
      %420 = vdwg.mxu0
      %v421 = vmul.f32 %v135, %v345
      %v422 = vmul.f32 %v136, %v368
      %v423 = vmul.f32 %v137, %v348
      %v424 = vmul.f32 %v138, %v371
      %v425 = vsub.f32 %v421, %v393
      %v426 = vsub.f32 %v422, %v416
      %v427 = vsub.f32 %v423, %v396
      %v428 = vsub.f32 %v424, %v419
      %v429 = vld [vmem:[%s5] sm:$0x3]
      %v431 = vperm.slane %v429, 0
      %v432 = vperm.slane %v429, 1
      %v435 = vadd.f32 %v425, %v431
      %v436 = vadd.f32 %v426, %v432
      %v437 = vadd.f32 %v427, %v431
      %v438 = vadd.f32 %v428, %v432
      %v439 = vmax.f32 %v435, 0.0
      %v440 = vmax.f32 %v436, 0.0
      %v441 = vmax.f32 %v437, 0.0
      %v442 = vmax.f32 %v438, 0.0
      %v443 = vld [vmem:[%s4] sm:$0xff]
      %v444 = vld [vmem:[%s4 + $0x8] sm:$0xff]
      %v445 = vld [vmem:[%s4 + $0x10] sm:$0xff]
      %v446 = vld [vmem:[%s4 + $0x18] sm:$0xff]
      %v447 = vld [vmem:[%s4 + $0x20] sm:$0xff]
      %v448 = vld [vmem:[%s4 + $0x28] sm:$0xff]
      %v449 = vld [vmem:[%s4 + $0x30] sm:$0xff]
      %v450 = vld [vmem:[%s4 + $0x38] sm:$0xff]
      %v451 = vld [vmem:[%s4 + $0x40] sm:$0xff]
      %v452 = vld [vmem:[%s4 + $0x48] sm:$0xff]
      %v453 = vld [vmem:[%s4 + $0x50] sm:$0xff]
      %v454 = vld [vmem:[%s4 + $0x58] sm:$0xff]
      %v455 = vld [vmem:[%s4 + $0x60] sm:$0xff]
      %v456 = vld [vmem:[%s4 + $0x68] sm:$0xff]
      %v457 = vld [vmem:[%s4 + $0x70] sm:$0xff]
      %v458 = vld [vmem:[%s4 + $0x78] sm:$0xff]
      %v459 = vld [vmem:[%s4 + $0x80] sm:$0xff]
      %v460 = vld [vmem:[%s4 + $0x88] sm:$0xff]
      %v461 = vld [vmem:[%s4 + $0x90] sm:$0xff]
      %v462 = vld [vmem:[%s4 + $0x98] sm:$0xff]
      %v463 = vld [vmem:[%s4 + $0xa0] sm:$0xff]
      %v464 = vld [vmem:[%s4 + $0xa8] sm:$0xff]
      %v465 = vld [vmem:[%s4 + $0xb0] sm:$0xff]
      %v466 = vld [vmem:[%s4 + $0xb8] sm:$0xff]
      %v467 = vld [vmem:[%s4 + $0xc0] sm:$0xff]
      %v468 = vld [vmem:[%s4 + $0xc8] sm:$0xff]
      %v469 = vld [vmem:[%s4 + $0xd0] sm:$0xff]
      %v470 = vld [vmem:[%s4 + $0xd8] sm:$0xff]
      %v471 = vld [vmem:[%s4 + $0xe0] sm:$0xff]
      %v472 = vld [vmem:[%s4 + $0xe8] sm:$0xff]
      %v473 = vld [vmem:[%s4 + $0xf0] sm:$0xff]
      %v474 = vld [vmem:[%s4 + $0xf8] sm:$0xff]
      %475 = vmatpush.msra.mxu0 %v458
      %476 = vmatpush.msra.mxu0 %v457
      %477 = vmatpush.msra.mxu0 %v456
      %478 = vmatpush.msra.mxu0 %v455
      %479 = vmatpush.msra.mxu0 %v454
      %480 = vmatpush.msra.mxu0 %v453
      %481 = vmatpush.msra.mxu0 %v452
      %482 = vmatpush.msra.mxu0 %v451
      %483 = vmatpush.msra.mxu0 %v450
      %484 = vmatpush.msra.mxu0 %v449
      %485 = vmatpush.msra.mxu0 %v448
      %486 = vmatpush.msra.mxu0 %v447
      %487 = vmatpush.msra.mxu0 %v446
      %488 = vmatpush.msra.mxu0 %v445
      %489 = vmatpush.msra.mxu0 %v444
      %490 = vmatpush.msra.mxu0 %v443
      %491 = vmatmul.f32.gmra.mxu0 %v439
      %v492 = vpop.f32.mrf.mxu0
      %v493 = vadd.f32 0.0, %v492
      %494 = vmatmul.f32.gmra.mxu0 %v441
      %v495 = vpop.f32.mrf.mxu0
      %v496 = vadd.f32 0.0, %v495
      %497 = vdwg.mxu0
      %498 = vmatpush.msra.mxu0 %v474
      %499 = vmatpush.msra.mxu0 %v473
      %500 = vmatpush.msra.mxu0 %v472
      %501 = vmatpush.msra.mxu0 %v471
      %502 = vmatpush.msra.mxu0 %v470
      %503 = vmatpush.msra.mxu0 %v469
      %504 = vmatpush.msra.mxu0 %v468
      %505 = vmatpush.msra.mxu0 %v467
      %506 = vmatpush.msra.mxu0 %v466
      %507 = vmatpush.msra.mxu0 %v465
      %508 = vmatpush.msra.mxu0 %v464
      %509 = vmatpush.msra.mxu0 %v463
      %510 = vmatpush.msra.mxu0 %v462
      %511 = vmatpush.msra.mxu0 %v461
      %512 = vmatpush.msra.mxu0 %v460
      %513 = vmatpush.msra.mxu0 %v459
      %514 = vmatmul.f32.gmra.mxu0 %v440
      %v515 = vpop.f32.mrf.mxu0
      %v516 = vadd.f32 %v493, %v515
      %517 = vmatmul.f32.gmra.mxu0 %v442
      %v518 = vpop.f32.mrf.mxu0
      %v519 = vadd.f32 %v496, %v518
      %520 = vdwg.mxu0
      %vm521 = vcmask 261120
      %522 = vst.msk [vmem:[#allocation3] sm:$0xff] %vm521, %v516
      %523 = vst.msk [vmem:[#allocation3 + $0x8] sm:$0xff] %vm521, %v519
    $region33: #{func_to_node_sum.1} parent=1 // pred_fallthru
      _
    // Predicated region
    $region34: #{func_to_node_sum.1} parent=1 // pred_check
      _
    $region35: #{func_to_node_sum.1} parent=1 // pred_check_branch
      %525 = sbr.rel (0) target = $region37
    $region36: #{func_to_node_sum.1} parent=1 // pred_region
      %527 = vsyncadd [#allocation4], 0
      %s528 = sshll.u32 [#allocation3], 4
      %s529 = int_to_ptr.vmem [resolvable:$true] %s528
      %s530 = sshll.u32 %s6, 4
      %s531 = int_to_ptr.hbm [resolvable:$true] %s530
      %536 = dma.vmem_to_hbm [thread:$0]  %s529, 256, %s531, [#allocation4], 128, 128, 8
    $region37: #{func_to_node_sum.1} parent=1 // pred_fallthru
      _
    // Predicated region
    $region38: #{func_to_node_sum.1} parent=1 // pred_check
      _
    $region39: #{func_to_node_sum.1} parent=1 // pred_check_branch
      %538 = sbr.rel (0) target = $region41
    $region40: #{func_to_node_sum.1} parent=1 // pred_region
      %540 = dma.done [#allocation4], 256
    $region41: #{func_to_node_sum.1} parent=1 // pred_fallthru
      _
    %541 = vsyncpa [#allocation4], 1

</llo_original>
